<compile_context>
chip_gen: v5e
topology: v5e:2x2
jax: 0.10.0
libtpu: 0.0.40
codegen_flags: <defaults>
</compile_context>

<pallas_src>
import jax
import jax.numpy as jnp
from jax.experimental import pallas as pl
from jax.experimental.pallas import tpu as pltpu

IN_FEATURES = 10
OUT_FEATURES = 5
LANE = 128
TILE_B = 8192  # default batch tile (rows); ~16 MiB of double-buffered VMEM


def linear_kernel(wt_ref, b_ref, x_ref, o_ref):
    # wt_ref: (IN, OUT)   - VMEM-resident across the grid (constant index_map)
    # b_ref:  (1, OUT)    - VMEM-resident
    # x_ref:  (tile, IN)  - natural row-major layout, contiguous HBM DMA
    # o_ref:  (tile, OUT) - natural layout, written straight to the result
    y = jnp.dot(x_ref[...], wt_ref[...], preferred_element_type=jnp.float32)
    o_ref[...] = (y + b_ref[...]).astype(o_ref.dtype)


def _round_up(n, m):
    return ((n + m - 1) // m) * m


def simple_cnn_forward(x, weight, bias, *, tile_b=TILE_B):
    """x: (B, IN) f32; weight: (OUT, IN) f32 (PyTorch layout); bias: (OUT,) f32.

    Returns (B, OUT) f32, identical math to torch.nn.Linear: y = x @ W.T + b.
    """
    B = x.shape[0]

    # --- tile / grid selection (static; shapes are known at trace time) -----
    # Keep >= 2 grid steps when there is enough work so the "parallel" batch
    # axis can shard across v7x's two TensorCores.  Tiles are multiples of 128
    # rows (sublane-aligned); the last block may be partial (Pallas masks it).
    n_steps = max(1, pl.cdiv(B, tile_b))
    if n_steps == 1 and B > LANE:
        n_steps = 2
    tile = min(_round_up(pl.cdiv(B, n_steps), LANE), _round_up(B, LANE))
    if tile >= B:
        tile = B  # one block equal to the full batch dim (always legal)
    grid = pl.cdiv(B, tile)

    wt = weight.T                        # (IN, OUT): tiny one-time transform
    b2d = bias.reshape(1, OUT_FEATURES)

    cost = pl.CostEstimate(
        flops=2 * B * IN_FEATURES * OUT_FEATURES,
        transcendentals=0,
        bytes_accessed=4 * (B * IN_FEATURES + B * OUT_FEATURES
                            + IN_FEATURES * OUT_FEATURES + OUT_FEATURES),
    )

    return pl.pallas_call(
        linear_kernel,
        out_shape=jax.ShapeDtypeStruct((B, OUT_FEATURES), jnp.float32),
        grid=(grid,),
        in_specs=[
            # Weight / bias: constant block index -> stay resident in VMEM.
            pl.BlockSpec((IN_FEATURES, OUT_FEATURES), lambda i: (0, 0)),
            pl.BlockSpec((1, OUT_FEATURES), lambda i: (0, 0)),
            # Activations: natural layout, tiled along batch, double-buffered.
            pl.BlockSpec((tile, IN_FEATURES), lambda i: (i, 0)),
        ],
        out_specs=pl.BlockSpec((tile, OUT_FEATURES), lambda i: (i, 0)),
        compiler_params=pltpu.CompilerParams(
            # Batch tiles are independent -> shard across v7x's 2 TensorCores;
            # neutral on single-TC v5e/v6e.
            dimension_semantics=("parallel",),
            # x/y tiles pad their minor dim to 128 lanes in VMEM (~512 B/row
            # each, double-buffered): 8192-row tiles need ~16 MiB total.
            vmem_limit_bytes=32 * 1024 * 1024,
        ),
        cost_estimate=cost,
    )(wt, b2d, x)


def init_params(key):
    # Deterministic init mimicking nn.Linear's uniform(-1/sqrt(in), 1/sqrt(in)).
    kw, kb = jax.random.split(key)
    bound = 1.0 / jnp.sqrt(jnp.float32(IN_FEATURES))
    weight = jax.random.uniform(
        kw, (OUT_FEATURES, IN_FEATURES), jnp.float32, minval=-bound, maxval=bound
    )
    bias = jax.random.uniform(
        kb, (OUT_FEATURES,), jnp.float32, minval=-bound, maxval=bound
    )
    return weight, bias


if __name__ == "__main__":
    key = jax.random.PRNGKey(0)
    k_x, k_p = jax.random.split(key)

    batch = 2
    x = jax.random.normal(k_x, (batch, IN_FEATURES), jnp.float32)
    weight, bias = init_params(k_p)

    out = jax.block_until_ready(simple_cnn_forward(x, weight, bias))
    ref = x @ weight.T + bias
    assert out.shape == (batch, OUT_FEATURES)
    assert jnp.allclose(out, ref, atol=1e-5, rtol=1e-5)

    # Multi-step grid with a ragged (partial) last block: B=2100 -> 2 tiles of
    # 1152 rows, last tile padded/masked by Pallas.
    big_b = 2100
    xb = jax.random.normal(jax.random.PRNGKey(1), (big_b, IN_FEATURES), jnp.float32)
    outb = jax.block_until_ready(simple_cnn_forward(xb, weight, bias))
    refb = xb @ weight.T + bias
    assert outb.shape == (big_b, OUT_FEATURES)
    assert jnp.allclose(outb, refb, atol=1e-5, rtol=1e-5)

    # Same batch with a small explicit tile: 5 grid steps, partial last block.
    outs = jax.block_until_ready(simple_cnn_forward(xb, weight, bias, tile_b=512))
    assert jnp.allclose(outs, refb, atol=1e-5, rtol=1e-5)

    print("KERNEL_OK")
</pallas_src>

<mosaic_0001>
module attributes {stable_mosaic.version = 11 : i64} {
  func.func @linear_kernel(%arg0: i32, %arg1: memref<10x5xf32, #tpu.memory_space<vmem>>, %arg2: memref<1x5xf32, #tpu.memory_space<vmem>>, %arg3: memref<2x10xf32, #tpu.memory_space<vmem>>, %arg4: memref<2x5xf32, #tpu.memory_space<vmem>>) attributes {dimension_semantics = [#tpu.dimension_semantics<parallel>], iteration_bounds = array<i64: 1>, scalar_prefetch = 0 : i64, scratch_operands = 0 : i64, tpu.core_type = #tpu.core_type<tc>, window_params = [{pipeline_mode = #tpu.pipeline_mode<synchronous>, transform_indices = @transform_0, window_bounds = array<i64: 10, 5>}, {pipeline_mode = #tpu.pipeline_mode<synchronous>, transform_indices = @transform_1, window_bounds = array<i64: 1, 5>}, {transform_indices = @transform_2, window_bounds = array<i64: 2, 10>}, {transform_indices = @transform_3, window_bounds = array<i64: 2, 5>}]} {
    %c0 = arith.constant 0 : index
    %c0_0 = arith.constant 0 : index
    %0 = vector.load %arg3[%c0, %c0_0] : memref<2x10xf32, #tpu.memory_space<vmem>>, vector<2x10xf32>
    %c0_1 = arith.constant 0 : index
    %c0_2 = arith.constant 0 : index
    %1 = vector.load %arg1[%c0_1, %c0_2] : memref<10x5xf32, #tpu.memory_space<vmem>>, vector<10x5xf32>
    %cst = arith.constant dense<0.000000e+00> : vector<2x5xf32>
    %2 = tpu.matmul %0, %1, %cst {dimension_numbers = #tpu.dot_dimension_numbers<[1], [0], [0], [1], [0, 0, 1, 1], [], []>} : vector<2x10xf32>, vector<10x5xf32>, vector<2x5xf32> -> vector<2x5xf32>
    %c0_3 = arith.constant 0 : index
    %c0_4 = arith.constant 0 : index
    %3 = vector.load %arg2[%c0_3, %c0_4] : memref<1x5xf32, #tpu.memory_space<vmem>>, vector<1x5xf32>
    %4 = vector.broadcast %3 : vector<1x5xf32> to vector<2x5xf32>
    %5 = arith.addf %2, %4 : vector<2x5xf32>
    %c0_5 = arith.constant 0 : index
    %c0_6 = arith.constant 0 : index
    %6 = vector.load %arg4[%c0_5, %c0_6] : memref<2x5xf32, #tpu.memory_space<vmem>>, vector<2x5xf32>
    tpu.vector_store %arg4[%c0_5, %c0_6], %5 {strides = array<i32>} : memref<2x5xf32, #tpu.memory_space<vmem>>, vector<2x5xf32>,
    return
  }
  func.func @transform_0(%arg0: i32) -> (i32, i32) {
    %c0_i32 = arith.constant 0 : i32
    %c0_i32_0 = arith.constant 0 : i32
    %c0_i32_1 = arith.constant 0 : i32
    return %c0_i32, %c0_i32_0 : i32, i32
  }
  func.func @transform_1(%arg0: i32) -> (i32, i32) {
    %c0_i32 = arith.constant 0 : i32
    %c0_i32_0 = arith.constant 0 : i32
    %c0_i32_1 = arith.constant 0 : i32
    return %c0_i32, %c0_i32_0 : i32, i32
  }
  func.func @transform_2(%arg0: i32) -> (i32, i32) {
    %c0_i32 = arith.constant 0 : i32
    %c0_i32_0 = arith.constant 0 : i32
    return %arg0, %c0_i32 : i32, i32
  }
  func.func @transform_3(%arg0: i32) -> (i32, i32) {
    %c0_i32 = arith.constant 0 : i32
    %c0_i32_0 = arith.constant 0 : i32
    return %arg0, %c0_i32 : i32, i32
  }
}

</mosaic_0001>

<llo_original>
// kernel: tpu_custom_call.1
$region0: #{tpu_custom_call.1}
  #allocation0 [shape = 'u32[]', space=smem, size = 0x4, offset = 0x4, fixed_abs, tag = 'smem constant byte address 0x4 - core index']
  #allocation1 [shape = 'u32[72,128]{1,0:T(1,128)}', space=vmem, size = 0x9000, scoped, tag = 'internal scratch']
  %s0 = inlined_call_operand.vmem [shape: f32[10,5], index: 0, kind: input, shape index: {}]
  %s1 = inlined_call_operand.vmem [shape: f32[1,5], index: 1, kind: input, shape index: {}]
  %s2 = inlined_call_operand.vmem [shape: f32[2,10], index: 2, kind: input, shape index: {}]
  %s3 = inlined_call_operand.hbm [shape: f32[2,5], index: 3, kind: output, shape index: {}]
  %s4 = sld [smem:[#allocation0]]
  $region22: #{tpu_custom_call.1} parent=0
    _
  %s6 = ssub.s32 1, %s4
  %s7 = scalar_select 0, %s6, %s4
  $region1: #{tpu_custom_call.1} parent=0
    #allocation2 [shape = 'u8[1024]{0}', space=vmem, size = 0x400, scoped, tag = 'output window, operand 0, single buffered']
    #allocation3 [shape = 's32[1]{0}', space=sflag, size = 0x4, scoped, tag = 'scoped memory for tpu_custom_call.1']
    %8 = vsyncpa [#allocation3], 0
    // Predicated region
    $region2: #{tpu_custom_call.1} parent=1 // pred_check
      _
    $region3: #{tpu_custom_call.1} parent=1 // pred_check_branch
      %10 = sbr.rel (0) target = $region5
    $region4: #{tpu_custom_call.1} parent=1 // pred_region
      _
    $region5: #{tpu_custom_call.1} parent=1 // pred_fallthru
      _
    // Predicated region
    $region6: #{tpu_custom_call.1} parent=1 // pred_check
      _
    $region7: #{tpu_custom_call.1} parent=1 // pred_check_branch
      %12 = sbr.rel (0) target = $region9
    $region8: #{tpu_custom_call.1} parent=1 // pred_region
      _
    $region9: #{tpu_custom_call.1} parent=1 // pred_fallthru
      _
    // Predicated region
    $region10: #{tpu_custom_call.1} parent=1 // pred_check
      _
    $region11: #{tpu_custom_call.1} parent=1 // pred_check_branch
      %14 = sbr.rel (0) target = $region13
    $region12: #{tpu_custom_call.1} parent=1 // pred_region
      _
    $region13: #{tpu_custom_call.1} parent=1 // pred_fallthru
      _
    %v15 = vld [vmem:[%s2] sm:$0x3]
    %v16 = vld [vmem:[%s0] sm:$0xff]
    %v17 = vld [vmem:[%s0 + $0x8] sm:$0x3]
    %v18 = vld [vmem:[%s1] sm:$0x1]
    %v20 = vperm.slane %v18, 0
    %vm22 = vcmask 80896
    %v24 = vsel %vm22, %v15, 0
    %vm26 = vcmask 1041408
    %v28 = vsel %vm26, %v17, 0
    %30 = vmatpush.msra.mxu0 0.0
    %31 = vmatpush.msra.mxu0 0.0
    %32 = vmatpush.msra.mxu0 0.0
    %33 = vmatpush.msra.mxu0 0.0
    %34 = vmatpush.msra.mxu0 0.0
    %35 = vmatpush.msra.mxu0 0.0
    %36 = vmatpush.msra.mxu0 0.0
    %37 = vmatpush.msra.mxu0 0.0
    %38 = vmatpush.msra.mxu0 0.0
    %39 = vmatpush.msra.mxu0 0.0
    %40 = vmatpush.msra.mxu0 0.0
    %41 = vmatpush.msra.mxu0 0.0
    %42 = vmatpush.msra.mxu0 0.0
    %43 = vmatpush.msra.mxu0 0.0
    %44 = vmatpush.msra.mxu0 %v28
    %45 = vmatpush.msra.mxu0 %v16
    %46 = vmatmul.f32.gmra.mxu0 %v24
    %v47 = vpop.f32.mrf.mxu0
    %v48 = vadd.f32 %v20, %v47
    %49 = vdwg.mxu0
    %vm50 = vcmask 33792
    %51 = vst.msk [vmem:[#allocation2] sm:$0x3] %vm50, %v48
    // Predicated region
    $region14: #{tpu_custom_call.1} parent=1 // pred_check
      _
    $region15: #{tpu_custom_call.1} parent=1 // pred_check_branch
      %53 = sbr.rel (0) target = $region17
    $region16: #{tpu_custom_call.1} parent=1 // pred_region
      %55 = vsyncadd [#allocation3], 0
      %s57 = sshll.u32 [#allocation2], 4
      %s58 = int_to_ptr.vmem [resolvable:$true] %s57
      %s59 = sshll.u32 %s3, 4
      %s60 = int_to_ptr.hbm [resolvable:$true] %s59
      %62 = dma.vmem_to_hbm [thread:$0]  %s58, 32, %s60, [#allocation3]
    $region17: #{tpu_custom_call.1} parent=1 // pred_fallthru
      _
    // Predicated region
    $region18: #{tpu_custom_call.1} parent=1 // pred_check
      _
    $region19: #{tpu_custom_call.1} parent=1 // pred_check_branch
      %64 = sbr.rel (0) target = $region21
    $region20: #{tpu_custom_call.1} parent=1 // pred_region
      %66 = dma.done [#allocation3], 32
    $region21: #{tpu_custom_call.1} parent=1 // pred_fallthru
      _
    %67 = vsyncpa [#allocation3], 1

</llo_original>
